<compile_context>
chip_gen: v7x
topology: tpu7x:2x2x1
jax: 0.10.0
libtpu: 0.0.40
codegen_flags: <defaults>
</compile_context>

<pallas_src>
import functools

import jax
import jax.numpy as jnp
from jax import lax
from jax.experimental import pallas as pl
from jax.experimental.pallas import tpu as pltpu


def _round_up(n, m):
    return ((n + m - 1) // m) * m


def _vmem_capacity_bytes():
    """Generation-aware physical VMEM size, with a safe (v7x-sized) fallback."""
    try:
        return int(pltpu.get_tpu_info().vmem_capacity_bytes)
    except Exception:
        return 64 * 1024 * 1024


def _pick_pool_tiles(B, C, HW, itemsize, vmem_cap):
    """Pick (tc, ts, n_c, n_s) for the pooling kernel.

    Block is (1, tc, ts): tc (channels) on sublanes, ts (folded H*W) on lanes.
    Constraints: ts % 128 == 0 or ts == HW;  tc % 8 == 0 or tc == C.
    """
    # Budget for the double-buffered input block, scaled to this chip's VMEM.
    budget = min(48 << 20, int(0.35 * vmem_cap))

    ts_cap = 32 * 1024
    if B == 1 and HW >= 256:
        # v7x megacore: guarantee >= 2 parallel (b, s) tiles when B == 1.
        ts_cap = min(ts_cap, _round_up((HW + 1) // 2, 128))
    ts = HW if HW <= ts_cap else (ts_cap // 128) * 128

    max_tc = max(1, budget // (2 * itemsize * ts))
    if C <= max_tc:
        tc = C                                   # full channel extent
    else:
        tc = max(8, (max_tc // 8) * 8)           # multiple of 8 sublanes
        while ts > 128 and 2 * itemsize * tc * ts > budget:
            ts = max(128, ((ts // 2) // 128) * 128)

    n_s = pl.cdiv(HW, ts)
    n_c = pl.cdiv(C, tc)
    return tc, ts, n_c, n_s


def _channel_pool_kernel(x_ref, out_ref, max_acc, sum_acc, *, n_c, tc, rem):
    # x_ref   : (1, tc, ts) VMEM block; channels on sublanes, H*W on lanes.
    # out_ref : (1, 2, ts)  VMEM block; row 0 = channel max, row 1 = channel sum.
    # max_acc : (8, ts) f32 VMEM scratch (running max, full-sublane partials).
    # sum_acc : (8, ts) f32 VMEM scratch (running sum, full-sublane partials).
    c_idx = pl.program_id(2)

    @pl.when(c_idx == 0)
    def _init():
        max_acc[...] = jnp.full(max_acc.shape, -jnp.inf, jnp.float32)
        sum_acc[...] = jnp.zeros(sum_acc.shape, jnp.float32)

    def accumulate(n_ch):
        # Single streaming pass: one cast per slab feeds both accumulators.
        n_full, tail = n_ch // 8, n_ch % 8
        if n_full > 16:
            # Large channel tiles: rolled loop (keeps code size bounded).
            def body(g, carry):
                off = pl.multiple_of(g * 8, 8)
                slab = x_ref[0, pl.ds(off, 8), :].astype(jnp.float32)
                max_acc[...] = jnp.maximum(max_acc[...], slab)
                sum_acc[...] = sum_acc[...] + slab
                return carry
            lax.fori_loop(0, n_full, body, 0, unroll=4)
        else:
            for g in range(n_full):
                slab = x_ref[0, g * 8:(g + 1) * 8, :].astype(jnp.float32)
                max_acc[...] = jnp.maximum(max_acc[...], slab)
                sum_acc[...] = sum_acc[...] + slab
        if tail:
            base = n_full * 8
            slab = x_ref[0, base:base + tail, :].astype(jnp.float32)
            max_acc[0:tail, :] = jnp.maximum(max_acc[0:tail, :], slab)
            sum_acc[0:tail, :] = sum_acc[0:tail, :] + slab

    if rem == tc:
        accumulate(tc)
    else:
        @pl.when(c_idx < n_c - 1)
        def _full_tile():
            accumulate(tc)

        @pl.when(c_idx == n_c - 1)
        def _partial_tile():
            accumulate(rem)

    @pl.when(c_idx == n_c - 1)
    def _finalize():
        # One cross-sublane reduce per (b, s) tile; untouched rows are -inf / 0.
        out_ref[0, 0:1, :] = jnp.max(max_acc[...], axis=0, keepdims=True)
        out_ref[0, 1:2, :] = jnp.sum(sum_acc[...], axis=0, keepdims=True)


def _conv_sigmoid_kernel(p_ref, w_ref, b_ref, o_ref, *, ksize):
    # p_ref : (1, 2, H, W) f32 VMEM block -- [max_pool, channel_sum]
    # w_ref : (2*k*k,) f32 SMEM -- flattened [in_ch, ky, kx]; avg half has 1/C
    #         pre-folded, so the channel SUM is used directly.
    # b_ref : (1,) f32 SMEM
    # o_ref : (1, 1, H, W) VMEM block
    pad = (ksize - 1) // 2
    max_pool = p_ref[0, 0]                                    # (H, W)
    avg_pool = p_ref[0, 1]                                    # (H, W) (sum)
    H, W = max_pool.shape

    # Zero-padded maps for the "same" conv, (8, 128)-aligned.
    ph = _round_up(H + ksize - 1, 8)
    pw = _round_up(W + ksize - 1, 128)
    zeros = jnp.zeros((ph, pw), jnp.float32)
    mp = lax.dynamic_update_slice(zeros, max_pool, (pad, pad))
    ap = lax.dynamic_update_slice(zeros, avg_pool, (pad, pad))

    # 2-in / 1-out k x k conv, unrolled: one lane shift per dx, reused for all dy.
    acc = jnp.zeros((H, W), jnp.float32)
    for dx in range(ksize):
        mp_dx = mp[:, dx:dx + W]
        ap_dx = ap[:, dx:dx + W]
        for dy in range(ksize):
            w_max = w_ref[0 * ksize * ksize + dy * ksize + dx]
            w_avg = w_ref[1 * ksize * ksize + dy * ksize + dx]
            acc = acc + w_max * mp_dx[dy:dy + H, :]
            acc = acc + w_avg * ap_dx[dy:dy + H, :]

    o_ref[0, 0, :, :] = jax.nn.sigmoid(acc + b_ref[0]).astype(o_ref.dtype)


def spatial_attention_map(x, conv_weight, conv_bias, kernel_size):
    """Returns the (B, 1, H, W) spatial-attention map (pre channel repeat).

    x: (B, C, H, W) float (f32 or bf16); conv_weight: (1, 2, k, k); conv_bias: (1,).
    """
    assert kernel_size % 2 == 1, "Odd kernel size required"
    B, C, H, W = x.shape
    k = kernel_size
    HW = H * W
    itemsize = x.dtype.itemsize

    vmem_cap = _vmem_capacity_bytes()
    tc, ts, n_c, n_s = _pick_pool_tiles(B, C, HW, itemsize, vmem_cap)
    rem = C - (n_c - 1) * tc

    # ---- Kernel A: channel max / sum pooling in a lane-dense folded layout ----
    x2 = x.reshape(B, C, HW)  # free: NCHW is contiguous.

    est_a = (2 * tc * ts * itemsize      # double-buffered input block
             + 2 * 2 * ts * 4            # double-buffered output block
             + 2 * 8 * ts * 4            # accumulators
             + (1 << 20))                # slack
    vmem_a = int(min(0.85 * vmem_cap, max(2 * est_a, 32 << 20)))

    pool_kernel = functools.partial(_channel_pool_kernel, n_c=n_c, tc=tc, rem=rem)
    pooled = pl.pallas_call(
        pool_kernel,
        out_shape=jax.ShapeDtypeStruct((B, 2, HW), jnp.float32),
        grid=(B, n_s, n_c),
        in_specs=[pl.BlockSpec((1, tc, ts), lambda b, s, c: (b, c, s))],
        out_specs=pl.BlockSpec((1, 2, ts), lambda b, s, c: (b, 0, s)),
        scratch_shapes=[pltpu.VMEM((8, ts), jnp.float32),
                        pltpu.VMEM((8, ts), jnp.float32)],
        compiler_params=pltpu.CompilerParams(
            dimension_semantics=("parallel", "parallel", "arbitrary"),
            vmem_limit_bytes=vmem_a),
    )(x2)

    pooled = pooled.reshape(B, 2, H, W)  # free reshape back to image layout.

    # ---- Kernel B: k x k conv + sigmoid (1/C folded into the avg weights) ----
    w2 = conv_weight.reshape(2, k * k).astype(jnp.float32)
    w_flat = jnp.concatenate([w2[0], w2[1] * (1.0 / C)]).reshape(2 * k * k)
    b_flat = conv_bias.reshape(1).astype(jnp.float32)

    ph = _round_up(H + k - 1, 8)
    pw = _round_up(W + k - 1, 128)
    est_b = (2 * 2 * H * W * 4 + 2 * H * W * max(4, itemsize)
             + 2 * ph * pw * 4 + 4 * H * W * 4 + (1 << 20))
    vmem_b = int(min(0.85 * vmem_cap, max(3 * est_b, 32 << 20)))

    conv_kernel = functools.partial(_conv_sigmoid_kernel, ksize=k)
    att = pl.pallas_call(
        conv_kernel,
        out_shape=jax.ShapeDtypeStruct((B, 1, H, W), x.dtype),
        grid=(B,),
        in_specs=[pl.BlockSpec((1, 2, H, W), lambda b: (b, 0, 0, 0)),
                  pl.BlockSpec(memory_space=pltpu.MemorySpace.SMEM),
                  pl.BlockSpec(memory_space=pltpu.MemorySpace.SMEM)],
        out_specs=pl.BlockSpec((1, 1, H, W), lambda b: (b, 0, 0, 0)),
        compiler_params=pltpu.CompilerParams(
            dimension_semantics=("parallel",),
            vmem_limit_bytes=vmem_b),
    )(pooled, w_flat, b_flat)
    return att


def spatial_attention(x, conv_weight, conv_bias, kernel_size):
    """Module-shaped output (B, C, H, W), matching `conv.repeat(1, C, 1, 1)`.

    The channel repeat is a lazy broadcast: inside a jit'd model it fuses into
    the consumer (e.g. `x * att`) and is never materialized in HBM.
    """
    B, C, H, W = x.shape
    att = spatial_attention_map(x, conv_weight, conv_bias, kernel_size)
    return jnp.broadcast_to(att, (B, C, H, W))


def _reference(x, conv_weight, conv_bias, kernel_size):
    # Pure-JAX reference mirroring the PyTorch forward.
    B, C, H, W = x.shape
    pad = (kernel_size - 1) // 2
    max_pool = jnp.max(x, axis=1, keepdims=True)              # (B,1,H,W)
    avg_pool = jnp.mean(x, axis=1, keepdims=True)             # (B,1,H,W)
    pool = jnp.concatenate([max_pool, avg_pool], axis=1)      # (B,2,H,W)
    conv = lax.conv_general_dilated(
        pool, conv_weight, window_strides=(1, 1),
        padding=((pad, pad), (pad, pad)),
        dimension_numbers=("NCHW", "OIHW", "NCHW")) + conv_bias.reshape(1, 1, 1, 1)
    conv = jnp.repeat(conv, C, axis=1)
    return jax.nn.sigmoid(conv)


if __name__ == "__main__":
    B, C, H, W = 2, 4, 16, 16
    kernel_size = 7

    key = jax.random.PRNGKey(0)
    kx, kw, kb = jax.random.split(key, 3)

    x = jax.random.normal(kx, (B, C, H, W), dtype=jnp.float32)

    # Conv2d(2, 1, k, padding=(k-1)//2) init: U(-1/sqrt(fan_in), 1/sqrt(fan_in)).
    fan_in = 2 * kernel_size * kernel_size
    bound = 1.0 / (fan_in ** 0.5)
    conv_weight = jax.random.uniform(
        kw, (1, 2, kernel_size, kernel_size), jnp.float32, -bound, bound)
    conv_bias = jax.random.uniform(kb, (1,), jnp.float32, -bound, bound)

    # Run the Pallas kernels once and block on the result.
    att_map = spatial_attention_map(x, conv_weight, conv_bias, kernel_size)
    att_map = jax.block_until_ready(att_map)

    ref = _reference(x, conv_weight, conv_bias, kernel_size)   # (B, C, H, W)
    assert att_map.shape == (B, 1, H, W)
    assert jnp.allclose(att_map, ref[:, :1], atol=1e-5, rtol=1e-5), \
        "attention map mismatch vs reference"

    # Module-shaped (B, C, H, W) output via the lazy channel repeat.
    att_full = spatial_attention(x, conv_weight, conv_bias, kernel_size)
    att_full = jax.block_until_ready(att_full)
    assert att_full.shape == (B, C, H, W)
    assert jnp.allclose(att_full, ref, atol=1e-5, rtol=1e-5), \
        "broadcast output mismatch vs reference"

    print("KERNEL_OK")
</pallas_src>

<mosaic_0001>
module attributes {stable_mosaic.version = 11 : i64} {
  func.func @_channel_pool_kernel(%arg0: i32, %arg1: i32, %arg2: i32, %arg3: memref<1x4x256xf32, #tpu.memory_space<vmem>>, %arg4: memref<1x2x256xf32, #tpu.memory_space<vmem>>, %arg5: memref<8x256xf32, #tpu.memory_space<vmem>>, %arg6: memref<8x256xf32, #tpu.memory_space<vmem>>) attributes {dimension_semantics = [#tpu.dimension_semantics<parallel>, #tpu.dimension_semantics<parallel>, #tpu.dimension_semantics<arbitrary>], iteration_bounds = array<i64: 2, 1, 1>, scalar_prefetch = 0 : i64, scratch_operands = 2 : i64, tpu.core_type = #tpu.core_type<tc>, window_params = [{transform_indices = @transform_0, window_bounds = array<i64: 1, 4, 256>}, {transform_indices = @transform_1, window_bounds = array<i64: 1, 2, 256>}]} {
    %c0_i32 = arith.constant 0 : i32
    %0 = arith.cmpi eq, %arg2, %c0_i32 : i32
    %1 = arith.extui %0 : i1 to i32
    %c0_i32_0 = arith.constant 0 : i32
    %2 = arith.cmpi ne, %1, %c0_i32_0 : i32
    scf.if %2 {
      %cst = arith.constant 0xFF800000 : f32
      %14 = vector.broadcast %cst : f32 to vector<8x256xf32>
      %c0_13 = arith.constant 0 : index
      %c0_14 = arith.constant 0 : index
      %15 = vector.load %arg5[%c0_13, %c0_14] : memref<8x256xf32, #tpu.memory_space<vmem>>, vector<8x256xf32>
      tpu.vector_store %arg5[%c0_13, %c0_14], %14 {strides = array<i32>} : memref<8x256xf32, #tpu.memory_space<vmem>>, vector<8x256xf32>,
      %cst_15 = arith.constant 0.000000e+00 : f32
      %16 = vector.broadcast %cst_15 : f32 to vector<8x256xf32>
      %c0_16 = arith.constant 0 : index
      %c0_17 = arith.constant 0 : index
      %17 = vector.load %arg6[%c0_16, %c0_17] : memref<8x256xf32, #tpu.memory_space<vmem>>, vector<8x256xf32>
      tpu.vector_store %arg6[%c0_16, %c0_17], %16 {strides = array<i32>} : memref<8x256xf32, #tpu.memory_space<vmem>>, vector<8x256xf32>,
    } else {
    }
    %c0 = arith.constant 0 : index
    %c0_1 = arith.constant 0 : index
    %c0_2 = arith.constant 0 : index
    %3 = vector.load %arg3[%c0, %c0_1, %c0_2] : memref<1x4x256xf32, #tpu.memory_space<vmem>>, vector<1x4x256xf32>
    %4 = vector.shape_cast %3 : vector<1x4x256xf32> to vector<4x256xf32>
    %c0_3 = arith.constant 0 : index
    %c0_4 = arith.constant 0 : index
    %5 = vector.load %arg5[%c0_3, %c0_4] : memref<8x256xf32, #tpu.memory_space<vmem>>, vector<4x256xf32>
    %6 = arith.maximumf %5, %4 : vector<4x256xf32>
    %c0_5 = arith.constant 0 : index
    %c0_6 = arith.constant 0 : index
    %7 = vector.load %arg5[%c0_5, %c0_6] : memref<8x256xf32, #tpu.memory_space<vmem>>, vector<4x256xf32>
    tpu.vector_store %arg5[%c0_5, %c0_6], %6 {strides = array<i32>} : memref<8x256xf32, #tpu.memory_space<vmem>>, vector<4x256xf32>,
    %c0_7 = arith.constant 0 : index
    %c0_8 = arith.constant 0 : index
    %8 = vector.load %arg6[%c0_7, %c0_8] : memref<8x256xf32, #tpu.memory_space<vmem>>, vector<4x256xf32>
    %9 = arith.addf %8, %4 : vector<4x256xf32>
    %c0_9 = arith.constant 0 : index
    %c0_10 = arith.constant 0 : index
    %10 = vector.load %arg6[%c0_9, %c0_10] : memref<8x256xf32, #tpu.memory_space<vmem>>, vector<4x256xf32>
    tpu.vector_store %arg6[%c0_9, %c0_10], %9 {strides = array<i32>} : memref<8x256xf32, #tpu.memory_space<vmem>>, vector<4x256xf32>,
    %c0_i32_11 = arith.constant 0 : i32
    %11 = arith.cmpi eq, %arg2, %c0_i32_11 : i32
    %12 = arith.extui %11 : i1 to i32
    %c0_i32_12 = arith.constant 0 : i32
    %13 = arith.cmpi ne, %12, %c0_i32_12 : i32
    scf.if %13 {
      %c0_13 = arith.constant 0 : index
      %c0_14 = arith.constant 0 : index
      %14 = vector.load %arg5[%c0_13, %c0_14] : memref<8x256xf32, #tpu.memory_space<vmem>>, vector<8x256xf32>
      %cst = arith.constant dense<0xFF800000> : vector<256xf32>
      %15 = vector.multi_reduction <maximumf>, %14, %cst [0] : vector<8x256xf32> to vector<256xf32>
      %16 = vector.shape_cast %15 : vector<256xf32> to vector<1x256xf32>
      %c0_15 = arith.constant 0 : index
      %c0_16 = arith.constant 0 : index
      %c0_17 = arith.constant 0 : index
      %17 = vector.load %arg4[%c0_15, %c0_16, %c0_17] : memref<1x2x256xf32, #tpu.memory_space<vmem>>, vector<1x1x256xf32>
      %18 = vector.shape_cast %17 : vector<1x1x256xf32> to vector<1x256xf32>
      %19 = vector.shape_cast %16 : vector<1x256xf32> to vector<1x1x256xf32>
      tpu.vector_store %arg4[%c0_15, %c0_16, %c0_17], %19 {strides = array<i32>} : memref<1x2x256xf32, #tpu.memory_space<vmem>>, vector<1x1x256xf32>,
      %c0_18 = arith.constant 0 : index
      %c0_19 = arith.constant 0 : index
      %20 = vector.load %arg6[%c0_18, %c0_19] : memref<8x256xf32, #tpu.memory_space<vmem>>, vector<8x256xf32>
      %cst_20 = arith.constant dense<0.000000e+00> : vector<256xf32>
      %21 = vector.multi_reduction <add>, %20, %cst_20 [0] : vector<8x256xf32> to vector<256xf32>
      %22 = vector.shape_cast %21 : vector<256xf32> to vector<1x256xf32>
      %c0_21 = arith.constant 0 : index
      %c1 = arith.constant 1 : index
      %c0_22 = arith.constant 0 : index
      %23 = vector.load %arg4[%c0_21, %c1, %c0_22] : memref<1x2x256xf32, #tpu.memory_space<vmem>>, vector<1x1x256xf32>
      %24 = vector.shape_cast %23 : vector<1x1x256xf32> to vector<1x256xf32>
      %25 = vector.shape_cast %22 : vector<1x256xf32> to vector<1x1x256xf32>
      tpu.vector_store %arg4[%c0_21, %c1, %c0_22], %25 {strides = array<i32>} : memref<1x2x256xf32, #tpu.memory_space<vmem>>, vector<1x1x256xf32>,
    } else {
    }
    return
  }
  func.func @transform_0(%arg0: i32, %arg1: i32, %arg2: i32) -> (i32, i32, i32) {
    %c0_i32 = arith.constant 0 : i32
    return %arg0, %arg2, %arg1 : i32, i32, i32
  }
  func.func @transform_1(%arg0: i32, %arg1: i32, %arg2: i32) -> (i32, i32, i32) {
    %c0_i32 = arith.constant 0 : i32
    %c0_i32_0 = arith.constant 0 : i32
    return %arg0, %c0_i32, %arg1 : i32, i32, i32
  }
}

</mosaic_0001>

<llo_original>
// kernel: tpu_custom_call.1
$region0: #{tpu_custom_call.1}
  #allocation0 [shape = 'u32[]', space=smem, size = 0x4, offset = 0x4, fixed_abs, tag = 'smem constant byte address 0x4 - core index']
  #allocation1 [shape = 'u32[144,128]{1,0:T(1,128)}', space=vmem, size = 0x12000, scoped, tag = 'internal scratch']
  #allocation2 [shape = 'f32[8,256]{1,0:T(8,128)}', space=vmem, size = 0x2000, scoped, tag = 'scratch operand']
  #allocation3 [shape = 'f32[8,256]{1,0:T(8,128)}', space=vmem, size = 0x2000, scoped, tag = 'scratch operand']
  %s0 = inlined_call_operand.hbm [shape: f32[2,4,256], index: 0, kind: input, shape index: {}]
  %s1 = inlined_call_operand.hbm [shape: f32[2,2,256], index: 1, kind: output, shape index: {}]
  %s2 = sld [smem:[#allocation0]]
  $region49: #{tpu_custom_call.1} parent=0
    _
  %s4 = ssub.s32 1, %s2
  %s5 = scalar_select 0, %s4, %s2
  $region1: #{tpu_custom_call.1} parent=0
    #allocation4 [shape = 'u8[8192]{0}', space=vmem, size = 0x2000, scoped, tag = 'input window, operand 0']
    #allocation5 [shape = 's32[2]{0}', space=sflag, size = 0x8, scoped, tag = 'scoped memory for tpu_custom_call.1']
    #allocation6 [shape = 's32[2]{0}', space=sflag, size = 0x8, scoped, tag = 'scoped memory for tpu_custom_call.1']
    #allocation7 [shape = 'u8[4096]{0}', space=vmem, size = 0x1000, scoped, tag = 'output window, operand 0']
    %6 = vsyncpa [#allocation5], 0
    %s7 = scalar_lea.sflag [#allocation5], 1
    %8 = vsyncpa %s7, 0
    %9 = vsyncpa [#allocation6], 0
    %s10 = scalar_lea.sflag [#allocation6], 1
    %11 = vsyncpa %s10, 0
    loop: start=0, step=1, limit=4
    $region2: #{tpu_custom_call.1} parent=1 // loop_pre_header
      _
    $region3: #{tpu_custom_call.1} parent=1 // loop_header
      %s13 = sphi 0, %s17
      %p14 = scmp.ge.s32.totalorder %s13, 4
      %s20 = sphi 0, %s39
      %s21 = sphi 0, %s35
      %s22 = sphi 0, %s31
      %s23 = sphi 0, %s20
      %s24 = sphi 0, %s21
      %s25 = sphi 0, %s22
      %s26 = sphi 0, %s23
      %s27 = sphi 0, %s24
      %s28 = sphi 0, %s25
      %s46 = sphi 0, %s48
      %s49 = sphi 0, %s46
      %s50 = sphi 0, %s49
      %s66 = sphi 0, %s50
      %s74 = sphi 0, %s76
      %s77 = sphi 0, %s74
      %s78 = sphi 0, %s77
      %s94 = sphi 0, %s78
    $region4: #{tpu_custom_call.1} parent=1 // loop_header_branch
      %16 = sbr.rel (%p14) target = $region8
    $region5: #{tpu_custom_call.1} parent=1 // loop_body
      %s18 = ssub.s32 %s13, 1
      %s19 = ssub.s32 %s13, 2
      %s29 = sadd.s32 1, %s22
      %p30 = scmp.ge.s32.totalorder %s29, 1
      %s31 = scalar_select %p30, 0, %s29
      %s32 = sadd.s32 1, %s21
      %s33 = scalar_select %p30, %s32, %s21
      %p34 = scmp.ge.s32.totalorder %s33, 1
      %s35 = scalar_select %p34, 0, %s33
      %s36 = sadd.s32 1, %s20
      %s37 = scalar_select %p34, %s36, %s20
      %p38 = scmp.ge.s32.totalorder %s37, 2
      %s39 = scalar_select %p38, 0, %s37
      %s40 = ssub.s32 %s20, %s39
      %s41 = ssub.s32 %s22, %s31
      %s42 = sor.u32 %s40, %s41
      %s43 = ssub.s32 %s21, %s35
      %s44 = sor.u32 %s42, %s43
      %p45 = scmp.eq.s32.totalorder %s44, 0
      %s47 = sadd.s32 %s46, 1
      %s48 = scalar_select %p45, %s46, %s47
      %p51 = pneg %p45
      %p52 = scmp.eq.s32.totalorder %s13, 1
      %p53 = por %p51, %p52
      %p54 = scmp.ne.s32.totalorder %s46, %s49
      %p55 = scmp.eq.s32.totalorder %s13, 0
      %p56 = por %p54, %p55
      %p57 = scmp.ne.s32.totalorder %s46, %s49
      %p58 = scmp.eq.s32.totalorder %s18, 1
      %p59 = por %p57, %p58
      %p60 = scmp.ne.s32.totalorder %s49, %s50
      %p61 = scmp.eq.s32.totalorder %s18, 0
      %p62 = por %p60, %p61
      %p63 = scmp.ne.s32.totalorder %s49, %s50
      %p64 = scmp.eq.s32.totalorder %s19, 1
      %p65 = por %p63, %p64
      %p67 = scmp.ne.s32.totalorder %s50, %s66
      %p68 = scmp.eq.s32.totalorder %s19, 0
      %p69 = por %p67, %p68
      %s70 = ssub.s32 %s20, %s39
      %s71 = ssub.s32 %s21, %s35
      %s72 = sor.u32 %s70, %s71
      %p73 = scmp.eq.s32.totalorder %s72, 0
      %s75 = sadd.s32 %s74, 1
      %s76 = scalar_select %p73, %s74, %s75
      %p79 = pneg %p73
      %p80 = scmp.eq.s32.totalorder %s13, 1
      %p81 = por %p79, %p80
      %p82 = scmp.ne.s32.totalorder %s74, %s77
      %p83 = scmp.eq.s32.totalorder %s13, 0
      %p84 = por %p82, %p83
      %p85 = scmp.ne.s32.totalorder %s74, %s77
      %p86 = scmp.eq.s32.totalorder %s18, 1
      %p87 = por %p85, %p86
      %p88 = scmp.ne.s32.totalorder %s77, %s78
      %p89 = scmp.eq.s32.totalorder %s18, 0
      %p90 = por %p88, %p89
      %p91 = scmp.ne.s32.totalorder %s77, %s78
      %p92 = scmp.eq.s32.totalorder %s19, 1
      %p93 = por %p91, %p92
      %p95 = scmp.ne.s32.totalorder %s78, %s94
      %p96 = scmp.eq.s32.totalorder %s19, 0
      %p97 = por %p95, %p96
      %p98 = scmp.le.s32.totalorder 1, %s13
      %p99 = scmp.lt.s32.totalorder %s13, 3
      %p100 = pnand %p98, %p99
      %p101 = pneg %p100
      // Predicated region
      $region9: #{tpu_custom_call.1} parent=5 // pred_check
        _
      $region10: #{tpu_custom_call.1} parent=5 // pred_check_branch
        %103 = sbr.rel (%p100) target = $region12
      $region11: #{tpu_custom_call.1} parent=5 // pred_region
        %s104 = ssub.s32 %s13, 1
      $region12: #{tpu_custom_call.1} parent=5 // pred_fallthru
        _
      %p105 = scmp.lt.s32.totalorder %s13, 2
      // Predicated region
      $region13: #{tpu_custom_call.1} parent=5 // pred_check
        %p106 = pneg %p105
      $region14: #{tpu_custom_call.1} parent=5 // pred_check_branch
        %108 = sbr.rel (%p106) target = $region16
      $region15: #{tpu_custom_call.1} parent=5 // pred_region
        // Predicated region
        $region17: #{tpu_custom_call.1} parent=15 // pred_check
          %p109 = pneg %p56
        $region18: #{tpu_custom_call.1} parent=15 // pred_check_branch
          %111 = sbr.rel (%p109) target = $region20
        $region19: #{tpu_custom_call.1} parent=15 // pred_region
          %s112 = sand.u32 %s46, 1
          %s113 = scalar_lea.sflag [#allocation5], %s112
          %s114 = sand.u32 %s46, 1
          %s115 = smul.addr %s114, 8
          %s116 = scalar_lea.vmem [#allocation4], %s115
          %s117 = smul.u32 2, %s21
          %s119 = ssub.s32 128, 128
          %120 = vsyncadd %s113, %s119
          %s121 = smul.addr %s22, 2
          %s122 = sadd.s32 %s117, %s121
          %s123 = smul.addr %s20, 2
          %s124 = sadd.s32 %s122, %s123
          %s125 = smul.addr %s124, 64
          %s126 = scalar_lea.hbm %s0, %s125
          %s128 = sshll.u32 %s116, 4
          %s129 = int_to_ptr.vmem [resolvable:$true] %s128
          %131 = dma.hbm_to_vmem [thread:$0]  %s126, 128, %s129, %s113
        $region20: #{tpu_custom_call.1} parent=15 // pred_fallthru
          _
      $region16: #{tpu_custom_call.1} parent=5 // pred_fallthru
        _
      %p132 = scmp.le.s32.totalorder 1, %s13
      %p133 = scmp.lt.s32.totalorder %s13, 3
      %p134 = pnand %p132, %p133
      %p135 = pneg %p134
      // Predicated region
      $region21: #{tpu_custom_call.1} parent=5 // pred_check
        _
      $region22: #{tpu_custom_call.1} parent=5 // pred_check_branch
        %137 = sbr.rel (%p134) target = $region24
      $region23: #{tpu_custom_call.1} parent=5 // pred_region
        %s138 = ssub.s32 %s13, 1
        %s139 = sand.u32 %s49, 1
        %s140 = scalar_lea.sflag [#allocation5], %s139
        %s141 = sand.u32 %s49, 1
        %s142 = smul.addr %s141, 8
        %s143 = scalar_lea.vmem [#allocation4], %s142
        // Predicated region
        $region25: #{tpu_custom_call.1} parent=23 // pred_check
          %p144 = pneg %p62
        $region26: #{tpu_custom_call.1} parent=23 // pred_check_branch
          %146 = sbr.rel (%p144) target = $region28
        $region27: #{tpu_custom_call.1} parent=23 // pred_region
          %147 = dma.done %s140, 128
        $region28: #{tpu_custom_call.1} parent=23 // pred_fallthru
          _
        %s148 = sand.u32 %s49, 1
        %s149 = scalar_lea.sflag [#allocation5], %s148
        %s150 = sand.u32 %s49, 1
        %s151 = smul.addr %s150, 8
        %s152 = scalar_lea.vmem [#allocation4], %s151
        %p153 = pneg %p62
        %p154 = pneg %p59
        %p155 = pneg %p90
        %p156 = pneg %p87
        %s157 = sand.u32 %s77, 1
        %s158 = scalar_lea.sflag [#allocation6], %s157
        %s159 = sand.u32 %s77, 1
        %s160 = smul.addr %s159, 4
        %s161 = scalar_lea.vmem [#allocation7], %s160
        %s162 = smul.u32 2, %s24
        %s163 = smul.u32 2, %s24
        %p164 = scmp.eq.s32.totalorder %s25, 0
        // Predicated region
        $region29: #{tpu_custom_call.1} parent=23 // pred_check
          %p165 = pneg %p164
        $region30: #{tpu_custom_call.1} parent=23 // pred_check_branch
          %167 = sbr.rel (%p165) target = $region32
        $region31: #{tpu_custom_call.1} parent=23 // pred_region
          %168 = vst [vmem:[#allocation2] sm:$0xff] -inf
          %169 = vst [vmem:[#allocation2 + $0x8] sm:$0xff] -inf
          %170 = vst [vmem:[#allocation3] sm:$0xff] 0.0
          %171 = vst [vmem:[#allocation3 + $0x8] sm:$0xff] 0.0
        $region32: #{tpu_custom_call.1} parent=23 // pred_fallthru
          _
        %v172 = vld [vmem:[%s143] sm:$0xff]
        %v173 = vld [vmem:[#allocation2] sm:$0xf]
        %v174 = vld [vmem:[#allocation2 + $0x8] sm:$0xf]
        %v176 = vcombine.high %v172, %v172
        %v178 = vmax.f32 %v173, %v172
        %v179 = vmax.f32 %v174, %v176
        %180 = vst [vmem:[#allocation2] sm:$0xf] %v178
        %181 = vst [vmem:[#allocation2 + $0x8] sm:$0xf] %v179
        %v182 = vld [vmem:[#allocation3] sm:$0xf]
        %v183 = vld [vmem:[#allocation3 + $0x8] sm:$0xf]
        %v184 = vadd.f32 %v182, %v172
        %v185 = vadd.f32 %v183, %v176
        %186 = vst [vmem:[#allocation3] sm:$0xf] %v184
        %187 = vst [vmem:[#allocation3 + $0x8] sm:$0xf] %v185
        // Predicated region
        $region33: #{tpu_custom_call.1} parent=23 // pred_check
          %p188 = pneg %p164
        $region34: #{tpu_custom_call.1} parent=23 // pred_check_branch
          %190 = sbr.rel (%p188) target = $region36
        $region35: #{tpu_custom_call.1} parent=23 // pred_region
          %v191 = vld [vmem:[#allocation2] sm:$0xff]
          %v192 = vld [vmem:[#allocation2 + $0x8] sm:$0xff]
          %v193 = vrot.slane %v191, 4
          %v194 = vmax.f32 %v191, %v193
          %v195 = vrot.slane %v194, 2
          %v196 = vmax.f32 %v194, %v195
          %v197 = vrot.slane %v196, 1
          %v198 = vmax.f32 %v196, %v197
          %v199 = vrot.slane %v192, 4
          %v200 = vmax.f32 %v192, %v199
          %v201 = vrot.slane %v200, 2
          %v202 = vmax.f32 %v200, %v201
          %v203 = vrot.slane %v202, 1
          %v204 = vmax.f32 %v202, %v203
          %v207 = vcombine.low %v198, %v204
          %v209 = vunpack.c.l.s4 1966171168
          %v210 = vunpack.c.0.s8 %v209
          %v211 = vlaneseq
          %v212 = vshrl.u32 %v211, 7
          %v213 = vsub.s32 %v210, %v212
          %v214 = vrot.slane %v207, %v213
          %v216 = vunpack.c.l.s4 1966171168
          %v217 = vunpack.c.0.s8 %v216
          %v218 = vlaneseq
          %v219 = vshrl.u32 %v218, 7
          %v220 = vsub.s32 %v217, %v219
          %v221 = vrot.slane %v214, %v220
          %v223 = vlaneseq
          %vm224 = vcmp.ge.s32.totalorder %v223, 0
          %vm225 = vcmp.lt.s32.totalorder %v223, 256
          %vm226 = vmand %vm224, %vm225
          %227 = vst.msk [vmem:[%s161] ss:$2 sm:$0x3] %vm226, %v221
          %v228 = vld [vmem:[#allocation3] sm:$0xff]
          %v229 = vld [vmem:[#allocation3 + $0x8] sm:$0xff]
          %v230 = vrot.slane %v228, 4
          %v231 = vadd.f32 %v228, %v230
          %v232 = vrot.slane %v231, 2
          %v233 = vadd.f32 %v231, %v232
          %v234 = vrot.slane %v233, 1
          %v235 = vadd.f32 %v233, %v234
          %v236 = vrot.slane %v229, 4
          %v237 = vadd.f32 %v229, %v236
          %v238 = vrot.slane %v237, 2
          %v239 = vadd.f32 %v237, %v238
          %v240 = vrot.slane %v239, 1
          %v241 = vadd.f32 %v239, %v240
          %v244 = vcombine.low %v235, %v241
          %v246 = vunpack.c.l.s4 1966171168
          %v247 = vunpack.c.0.s8 %v246
          %v248 = vlaneseq
          %v249 = vshrl.u32 %v248, 7
          %v250 = vsub.s32 %v247, %v249
          %v251 = vrot.slane %v244, %v250
          %v253 = vunpack.c.l.s4 1966171168
          %v254 = vunpack.c.0.s8 %v253
          %v255 = vlaneseq
          %v256 = vshrl.u32 %v255, 7
          %v257 = vsub.s32 %v254, %v256
          %v258 = vrot.slane %v251, %v257
          %s260 = scalar_lea.vmem %s161, 1 [#allocation7]
          %261 = vst.msk [vmem:[%s260] ss:$2 sm:$0x3] %vm226, %v258
        $region36: #{tpu_custom_call.1} parent=23 // pred_fallthru
          _
        %s262 = sand.u32 %s77, 1
        %s263 = scalar_lea.sflag [#allocation6], %s262
        %s264 = sand.u32 %s77, 1
        %s265 = smul.addr %s264, 4
        %s266 = scalar_lea.vmem [#allocation7], %s265
        // Predicated region
        $region37: #{tpu_custom_call.1} parent=23 // pred_check
          %p267 = pneg %p87
        $region38: #{tpu_custom_call.1} parent=23 // pred_check_branch
          %269 = sbr.rel (%p267) target = $region40
        $region39: #{tpu_custom_call.1} parent=23 // pred_region
          %s270 = smul.u32 2, %s24
          %s272 = ssub.s32 64, 64
          %273 = vsyncadd %s263, %s272
          %s274 = smul.addr %s23, 2
          %s275 = sadd.s32 %s270, %s274
          %s276 = smul.addr %s275, 32
          %s277 = scalar_lea.hbm %s1, %s276
          %s279 = sshll.u32 %s266, 4
          %s280 = int_to_ptr.vmem [resolvable:$true] %s279
          %282 = dma.vmem_to_hbm [thread:$0]  %s280, 64, %s277, %s263
        $region40: #{tpu_custom_call.1} parent=23 // pred_fallthru
          _
      $region24: #{tpu_custom_call.1} parent=5 // pred_fallthru
        _
      %p283 = scmp.le.s32.totalorder 2, %s13
      // Predicated region
      $region41: #{tpu_custom_call.1} parent=5 // pred_check
        %p284 = pneg %p283
      $region42: #{tpu_custom_call.1} parent=5 // pred_check_branch
        %286 = sbr.rel (%p284) target = $region44
      $region43: #{tpu_custom_call.1} parent=5 // pred_region
        %s287 = ssub.s32 %s13, 2
        // Predicated region
        $region45: #{tpu_custom_call.1} parent=43 // pred_check
          %p288 = pneg %p93
        $region46: #{tpu_custom_call.1} parent=43 // pred_check_branch
          %290 = sbr.rel (%p288) target = $region48
        $region47: #{tpu_custom_call.1} parent=43 // pred_region
          %s291 = sand.u32 %s78, 1
          %s292 = scalar_lea.sflag [#allocation6], %s291
          %s293 = sand.u32 %s78, 1
          %s294 = smul.addr %s293, 4
          %s295 = scalar_lea.vmem [#allocation7], %s294
          %296 = dma.done %s292, 64
        $region48: #{tpu_custom_call.1} parent=43 // pred_fallthru
          _
      $region44: #{tpu_custom_call.1} parent=5 // pred_fallthru
        _
    $region6: #{tpu_custom_call.1} parent=1 // loop_footer
      %s17 = sadd.s32 1, %s13
    $region7: #{tpu_custom_call.1} parent=1 // loop_footer_branch
      %12 = sbr.rel target = $region3
    $region8: #{tpu_custom_call.1} parent=1 // loop_exit
      _
    %297 = vsyncpa [#allocation5], 1
    %s298 = scalar_lea.sflag [#allocation5], 1
    %299 = vsyncpa %s298, 1
    %300 = vsyncpa [#allocation6], 1
    %s301 = scalar_lea.sflag [#allocation6], 1
    %302 = vsyncpa %s301, 1

</llo_original>
